<compile_context>
chip_gen: v7x
topology: tpu7x:2x2x1
jax: 0.10.0
libtpu: 0.0.40
codegen_flags: <defaults>
</compile_context>

<pallas_src>
import functools

import jax
import jax.numpy as jnp
from jax.experimental import pallas as pl
from jax.experimental.pallas import tpu as pltpu

NEG_SLOPE = 0.2        # PyG GATConv default LeakyReLU negative slope
MASK_NEG = -1e30       # additive mask value (representable in bf16 and f32)


def _gat_layer_kernel(feat_ref, w_ref, e_src_ref, e_dst_ref, mask_ref, b_ref,
                      o_ref, *, apply_relu: bool):
    """One row tile (TM target nodes) of a single GATConv layer."""
    # h for ALL source nodes — every row tile needs the full (N, Fout) value
    # matrix; the per-step recompute is tiny next to the N^2 aggregation.
    h = jnp.dot(feat_ref[...], w_ref[...],
                preferred_element_type=jnp.float32)          # (N, Fp)  f32 acc

    # Attention logits for this row tile: (TM,1) + (1,N) -> (TM,N).
    scores = e_dst_ref[...] + e_src_ref[...]
    scores = jnp.where(scores > 0, scores, NEG_SLOPE * scores)   # LeakyReLU
    scores = scores + mask_ref[...].astype(jnp.float32)          # edge mask

    # Row-wise softmax (max/sum/recip on (TM,1) are cheap; exp dominates).
    m = jnp.max(scores, axis=-1, keepdims=True)
    p = jnp.exp(scores - m)
    denom = jnp.sum(p, axis=-1, keepdims=True)
    alpha = p * (1.0 / denom)                                    # exact, tiny

    out = jnp.dot(alpha.astype(jnp.bfloat16), h.astype(jnp.bfloat16),
                  preferred_element_type=jnp.float32)            # (TM, Fp)
    out = out + b_ref[...]
    if apply_relu:
        out = jnp.maximum(out, 0.0)
    o_ref[...] = out                                             # lane-dense


def _gat_layer(feat, mask_bias_bf16, w, a_src, a_dst, b, *,
               out_pad: int, apply_relu: bool, tile_rows: int = 256):
    """One GATConv layer: returns (N, out_pad) f32 (caller slices if padded)."""
    n, fin = feat.shape
    fout = w.shape[1]

    # Host-side narrow products (f32, negligible work) — keeps the kernel free
    # of sub-lane-group column slicing and of narrow (N,Fout)@(Fout,1) matmuls.
    e_src = (feat @ (w @ a_src)).reshape(1, n).astype(jnp.float32)   # (1, N)
    e_dst = (feat @ (w @ a_dst)).reshape(n, 1).astype(jnp.float32)   # (N, 1)

    w_p = jnp.pad(w, ((0, 0), (0, out_pad - fout))) if out_pad > fout else w
    b_p = jnp.pad(b, ((0, 0), (0, out_pad - fout))) if out_pad > fout else b
    feat_bf = feat.astype(jnp.bfloat16)
    w_bf = w_p.astype(jnp.bfloat16)

    tm = min(tile_rows, n)
    steps = (n + tm - 1) // tm

    def full(shape):
        return pl.BlockSpec(shape, lambda i: (0,) * len(shape))

    flops = int(2 * n * fin * out_pad * steps       # recomputed feature matmul
                + 2 * n * n * out_pad               # alpha @ h aggregation
                + 10 * n * n)                       # score / softmax chain
    transcendentals = int(n * n)
    bytes_accessed = int(2 * n * n                  # bf16 mask
                         + 2 * n * fin + 2 * fin * out_pad
                         + 4 * n + 4 * n + 4 * out_pad
                         + 4 * n * out_pad)

    kern = functools.partial(_gat_layer_kernel, apply_relu=apply_relu)
    return pl.pallas_call(
        kern,
        out_shape=jax.ShapeDtypeStruct((n, out_pad), jnp.float32),
        grid=(steps,),
        in_specs=[
            full((n, fin)),                              # feat   (resident, bf16)
            full((fin, out_pad)),                        # W      (resident, bf16)
            full((1, n)),                                # e_src row (f32)
            pl.BlockSpec((tm, 1), lambda i: (i, 0)),     # e_dst tile (f32)
            pl.BlockSpec((tm, n), lambda i: (i, 0)),     # mask tile (bf16)
            full((1, out_pad)),                          # bias   (f32)
        ],
        out_specs=pl.BlockSpec((tm, out_pad), lambda i: (i, 0)),
        compiler_params=pltpu.CompilerParams(
            dimension_semantics=("parallel",),
            vmem_limit_bytes=64 * 1024 * 1024),
        cost_estimate=pl.CostEstimate(
            flops=flops, transcendentals=transcendentals,
            bytes_accessed=bytes_accessed),
    )(feat_bf, w_bf, e_src, e_dst, mask_bias_bf16, b_p)


def gat_forward(x, adj, params):
    """GAT.forward with num_layers=2 (no middle convs), inference mode."""
    n = x.shape[0]
    w0, a_src0, a_dst0, b0 = params["lin0"]
    w1, a_src1, a_dst1, b1 = params["lin1"]
    hidden = w0.shape[1]
    out_dim = w1.shape[1]
    out_pad = max(128, ((out_dim + 127) // 128) * 128)   # lane-dense final slab

    # Additive edge mask (edges + self loops), bf16 to halve the N^2 HBM stream.
    edge = jnp.logical_or(adj != 0, jnp.eye(n, dtype=bool))
    mask_bias = jnp.where(edge, 0.0, MASK_NEG).astype(jnp.bfloat16)

    # TODO(synk): F.dropout is identity here (inference mode).
    z0 = _gat_layer(x, mask_bias, w0, a_src0, a_dst0, b0,
                    out_pad=hidden, apply_relu=True)          # (N, hidden) f32
    out = _gat_layer(z0, mask_bias, w1, a_src1, a_dst1, b1,
                     out_pad=out_pad, apply_relu=False)       # (N, out_pad)
    return out[:, :out_dim]


def _glorot(key, shape):
    fan_in, fan_out = shape[0], shape[1]
    limit = jnp.sqrt(6.0 / (fan_in + fan_out))
    return jax.random.uniform(key, shape, jnp.float32, -limit, limit)


def init_gat_params(key, num_features, hidden_channels, out_dim):
    ks = jax.random.split(key, 6)
    return {
        "lin0": (
            _glorot(ks[0], (num_features, hidden_channels)),   # W
            _glorot(ks[1], (hidden_channels, 1)),               # a_src
            _glorot(ks[2], (hidden_channels, 1)),               # a_dst
            jnp.zeros((1, hidden_channels), jnp.float32),        # bias
        ),
        "lin1": (
            _glorot(ks[3], (hidden_channels, out_dim)),
            _glorot(ks[4], (out_dim, 1)),
            _glorot(ks[5], (out_dim, 1)),
            jnp.zeros((1, out_dim), jnp.float32),
        ),
    }


if __name__ == "__main__":
    key = jax.random.PRNGKey(0)
    k_x, k_adj, k_params = jax.random.split(key, 3)

    N = 64            # number of graph nodes
    NUM_FEATURES = 16
    HIDDEN = 32
    OUT_DIM = 8

    x = jax.random.normal(k_x, (N, NUM_FEATURES), jnp.float32)
    adj = (jax.random.uniform(k_adj, (N, N)) < 0.1).astype(jnp.float32)
    adj = jnp.maximum(adj, adj.T)  # symmetric, dense 0/1 adjacency

    params = init_gat_params(k_params, NUM_FEATURES, HIDDEN, OUT_DIM)

    out = jax.jit(gat_forward)(x, adj, params)
    jax.block_until_ready(out)
    assert out.shape == (N, OUT_DIM) and out.dtype == jnp.float32
    print("KERNEL_OK")
</pallas_src>

<mosaic_0001>
module attributes {stable_mosaic.version = 11 : i64} {
  func.func @_gat_layer_kernel(%arg0: i32, %arg1: memref<64x16xbf16, #tpu.memory_space<vmem>>, %arg2: memref<16x32xbf16, #tpu.memory_space<vmem>>, %arg3: memref<1x64xf32, #tpu.memory_space<vmem>>, %arg4: memref<64x1xf32, #tpu.memory_space<vmem>>, %arg5: memref<64x64xbf16, #tpu.memory_space<vmem>>, %arg6: memref<1x32xf32, #tpu.memory_space<vmem>>, %arg7: memref<64x32xf32, #tpu.memory_space<vmem>>) attributes {dimension_semantics = [#tpu.dimension_semantics<parallel>], iteration_bounds = array<i64: 1>, scalar_prefetch = 0 : i64, scratch_operands = 0 : i64, tpu.core_type = #tpu.core_type<tc>, window_params = [{pipeline_mode = #tpu.pipeline_mode<synchronous>, transform_indices = @transform_0, window_bounds = array<i64: 64, 16>}, {pipeline_mode = #tpu.pipeline_mode<synchronous>, transform_indices = @transform_1, window_bounds = array<i64: 16, 32>}, {pipeline_mode = #tpu.pipeline_mode<synchronous>, transform_indices = @transform_2, window_bounds = array<i64: 1, 64>}, {transform_indices = @transform_3, window_bounds = array<i64: 64, 1>}, {transform_indices = @transform_4, window_bounds = array<i64: 64, 64>}, {pipeline_mode = #tpu.pipeline_mode<synchronous>, transform_indices = @transform_5, window_bounds = array<i64: 1, 32>}, {transform_indices = @transform_6, window_bounds = array<i64: 64, 32>}]} {
    %c0 = arith.constant 0 : index
    %c0_0 = arith.constant 0 : index
    %0 = vector.load %arg1[%c0, %c0_0] : memref<64x16xbf16, #tpu.memory_space<vmem>>, vector<64x16xbf16>
    %c0_1 = arith.constant 0 : index
    %c0_2 = arith.constant 0 : index
    %1 = vector.load %arg2[%c0_1, %c0_2] : memref<16x32xbf16, #tpu.memory_space<vmem>>, vector<16x32xbf16>
    %cst = arith.constant dense<0.000000e+00> : vector<64x32xf32>
    %2 = tpu.matmul %0, %1, %cst {dimension_numbers = #tpu.dot_dimension_numbers<[1], [0], [0], [1], [0, 0, 1, 1], [], []>} : vector<64x16xbf16>, vector<16x32xbf16>, vector<64x32xf32> -> vector<64x32xf32>
    %c0_3 = arith.constant 0 : index
    %c0_4 = arith.constant 0 : index
    %3 = vector.load %arg4[%c0_3, %c0_4] : memref<64x1xf32, #tpu.memory_space<vmem>>, vector<64x1xf32>
    %c0_5 = arith.constant 0 : index
    %c0_6 = arith.constant 0 : index
    %4 = vector.load %arg3[%c0_5, %c0_6] : memref<1x64xf32, #tpu.memory_space<vmem>>, vector<1x64xf32>
    %5 = vector.broadcast %3 : vector<64x1xf32> to vector<64x64xf32>
    %6 = vector.broadcast %4 : vector<1x64xf32> to vector<64x64xf32>
    %7 = arith.addf %5, %6 : vector<64x64xf32>
    %cst_7 = arith.constant 0.000000e+00 : f32
    %8 = vector.broadcast %cst_7 : f32 to vector<64x64xf32>
    %9 = arith.cmpf ogt, %7, %8 : vector<64x64xf32>
    %cst_8 = arith.constant 2.000000e-01 : f32
    %10 = vector.broadcast %cst_8 : f32 to vector<64x64xf32>
    %11 = arith.mulf %10, %7 : vector<64x64xf32>
    %12 = arith.select %9, %7, %11 : vector<64x64xi1>, vector<64x64xf32>
    %c0_9 = arith.constant 0 : index
    %c0_10 = arith.constant 0 : index
    %13 = vector.load %arg5[%c0_9, %c0_10] : memref<64x64xbf16, #tpu.memory_space<vmem>>, vector<64x64xbf16>
    %14 = arith.extf %13 : vector<64x64xbf16> to vector<64x64xf32>
    %15 = arith.addf %12, %14 : vector<64x64xf32>
    %cst_11 = arith.constant dense<0xFF800000> : vector<64xf32>
    %16 = vector.multi_reduction <maximumf>, %15, %cst_11 [1] : vector<64x64xf32> to vector<64xf32>
    %17 = vector.shape_cast %16 : vector<64xf32> to vector<64x1xf32>
    %18 = vector.broadcast %17 : vector<64x1xf32> to vector<64x64xf32>
    %19 = arith.subf %15, %18 : vector<64x64xf32>
    %20 = math.exp %19 : vector<64x64xf32>
    %cst_12 = arith.constant dense<0.000000e+00> : vector<64xf32>
    %21 = vector.multi_reduction <add>, %20, %cst_12 [1] : vector<64x64xf32> to vector<64xf32>
    %22 = vector.shape_cast %21 : vector<64xf32> to vector<64x1xf32>
    %cst_13 = arith.constant 1.000000e+00 : f32
    %23 = vector.broadcast %cst_13 : f32 to vector<64x1xf32>
    %24 = arith.divf %23, %22 : vector<64x1xf32>
    %25 = vector.broadcast %24 : vector<64x1xf32> to vector<64x64xf32>
    %26 = arith.mulf %20, %25 : vector<64x64xf32>
    %27 = arith.truncf %26 : vector<64x64xf32> to vector<64x64xbf16>
    %28 = arith.truncf %2 : vector<64x32xf32> to vector<64x32xbf16>
    %cst_14 = arith.constant dense<0.000000e+00> : vector<64x32xf32>
    %29 = tpu.matmul %27, %28, %cst_14 {dimension_numbers = #tpu.dot_dimension_numbers<[1], [0], [0], [1], [0, 0, 1, 1], [], []>} : vector<64x64xbf16>, vector<64x32xbf16>, vector<64x32xf32> -> vector<64x32xf32>
    %c0_15 = arith.constant 0 : index
    %c0_16 = arith.constant 0 : index
    %30 = vector.load %arg6[%c0_15, %c0_16] : memref<1x32xf32, #tpu.memory_space<vmem>>, vector<1x32xf32>
    %31 = vector.broadcast %30 : vector<1x32xf32> to vector<64x32xf32>
    %32 = arith.addf %29, %31 : vector<64x32xf32>
    %cst_17 = arith.constant 0.000000e+00 : f32
    %33 = vector.broadcast %cst_17 : f32 to vector<64x32xf32>
    %34 = arith.maximumf %32, %33 : vector<64x32xf32>
    %c0_18 = arith.constant 0 : index
    %c0_19 = arith.constant 0 : index
    %35 = vector.load %arg7[%c0_18, %c0_19] : memref<64x32xf32, #tpu.memory_space<vmem>>, vector<64x32xf32>
    tpu.vector_store %arg7[%c0_18, %c0_19], %34 {strides = array<i32>} : memref<64x32xf32, #tpu.memory_space<vmem>>, vector<64x32xf32>,
    return
  }
  func.func @transform_0(%arg0: i32) -> (i32, i32) {
    %c0_i32 = arith.constant 0 : i32
    %c0_i32_0 = arith.constant 0 : i32
    %c0_i32_1 = arith.constant 0 : i32
    return %c0_i32, %c0_i32_0 : i32, i32
  }
  func.func @transform_1(%arg0: i32) -> (i32, i32) {
    %c0_i32 = arith.constant 0 : i32
    %c0_i32_0 = arith.constant 0 : i32
    %c0_i32_1 = arith.constant 0 : i32
    return %c0_i32, %c0_i32_0 : i32, i32
  }
  func.func @transform_2(%arg0: i32) -> (i32, i32) {
    %c0_i32 = arith.constant 0 : i32
    %c0_i32_0 = arith.constant 0 : i32
    %c0_i32_1 = arith.constant 0 : i32
    return %c0_i32, %c0_i32_0 : i32, i32
  }
  func.func @transform_3(%arg0: i32) -> (i32, i32) {
    %c0_i32 = arith.constant 0 : i32
    %c0_i32_0 = arith.constant 0 : i32
    return %arg0, %c0_i32 : i32, i32
  }
  func.func @transform_4(%arg0: i32) -> (i32, i32) {
    %c0_i32 = arith.constant 0 : i32
    %c0_i32_0 = arith.constant 0 : i32
    return %arg0, %c0_i32 : i32, i32
  }
  func.func @transform_5(%arg0: i32) -> (i32, i32) {
    %c0_i32 = arith.constant 0 : i32
    %c0_i32_0 = arith.constant 0 : i32
    %c0_i32_1 = arith.constant 0 : i32
    return %c0_i32, %c0_i32_0 : i32, i32
  }
  func.func @transform_6(%arg0: i32) -> (i32, i32) {
    %c0_i32 = arith.constant 0 : i32
    %c0_i32_0 = arith.constant 0 : i32
    return %arg0, %c0_i32 : i32, i32
  }
}

module attributes {stable_mosaic.version = 11 : i64} {
  func.func @_gat_layer_kernel(%arg0: i32, %arg1: memref<64x32xbf16, #tpu.memory_space<vmem>>, %arg2: memref<32x128xbf16, #tpu.memory_space<vmem>>, %arg3: memref<1x64xf32, #tpu.memory_space<vmem>>, %arg4: memref<64x1xf32, #tpu.memory_space<vmem>>, %arg5: memref<64x64xbf16, #tpu.memory_space<vmem>>, %arg6: memref<1x128xf32, #tpu.memory_space<vmem>>, %arg7: memref<64x128xf32, #tpu.memory_space<vmem>>) attributes {dimension_semantics = [#tpu.dimension_semantics<parallel>], iteration_bounds = array<i64: 1>, scalar_prefetch = 0 : i64, scratch_operands = 0 : i64, tpu.core_type = #tpu.core_type<tc>, window_params = [{pipeline_mode = #tpu.pipeline_mode<synchronous>, transform_indices = @transform_0, window_bounds = array<i64: 64, 32>}, {pipeline_mode = #tpu.pipeline_mode<synchronous>, transform_indices = @transform_1, window_bounds = array<i64: 32, 128>}, {pipeline_mode = #tpu.pipeline_mode<synchronous>, transform_indices = @transform_2, window_bounds = array<i64: 1, 64>}, {transform_indices = @transform_3, window_bounds = array<i64: 64, 1>}, {transform_indices = @transform_4, window_bounds = array<i64: 64, 64>}, {pipeline_mode = #tpu.pipeline_mode<synchronous>, transform_indices = @transform_5, window_bounds = array<i64: 1, 128>}, {transform_indices = @transform_6, window_bounds = array<i64: 64, 128>}]} {
    %c0 = arith.constant 0 : index
    %c0_0 = arith.constant 0 : index
    %0 = vector.load %arg1[%c0, %c0_0] : memref<64x32xbf16, #tpu.memory_space<vmem>>, vector<64x32xbf16>
    %c0_1 = arith.constant 0 : index
    %c0_2 = arith.constant 0 : index
    %1 = vector.load %arg2[%c0_1, %c0_2] : memref<32x128xbf16, #tpu.memory_space<vmem>>, vector<32x128xbf16>
    %cst = arith.constant dense<0.000000e+00> : vector<64x128xf32>
    %2 = tpu.matmul %0, %1, %cst {dimension_numbers = #tpu.dot_dimension_numbers<[1], [0], [0], [1], [0, 0, 1, 1], [], []>} : vector<64x32xbf16>, vector<32x128xbf16>, vector<64x128xf32> -> vector<64x128xf32>
    %c0_3 = arith.constant 0 : index
    %c0_4 = arith.constant 0 : index
    %3 = vector.load %arg4[%c0_3, %c0_4] : memref<64x1xf32, #tpu.memory_space<vmem>>, vector<64x1xf32>
    %c0_5 = arith.constant 0 : index
    %c0_6 = arith.constant 0 : index
    %4 = vector.load %arg3[%c0_5, %c0_6] : memref<1x64xf32, #tpu.memory_space<vmem>>, vector<1x64xf32>
    %5 = vector.broadcast %3 : vector<64x1xf32> to vector<64x64xf32>
    %6 = vector.broadcast %4 : vector<1x64xf32> to vector<64x64xf32>
    %7 = arith.addf %5, %6 : vector<64x64xf32>
    %cst_7 = arith.constant 0.000000e+00 : f32
    %8 = vector.broadcast %cst_7 : f32 to vector<64x64xf32>
    %9 = arith.cmpf ogt, %7, %8 : vector<64x64xf32>
    %cst_8 = arith.constant 2.000000e-01 : f32
    %10 = vector.broadcast %cst_8 : f32 to vector<64x64xf32>
    %11 = arith.mulf %10, %7 : vector<64x64xf32>
    %12 = arith.select %9, %7, %11 : vector<64x64xi1>, vector<64x64xf32>
    %c0_9 = arith.constant 0 : index
    %c0_10 = arith.constant 0 : index
    %13 = vector.load %arg5[%c0_9, %c0_10] : memref<64x64xbf16, #tpu.memory_space<vmem>>, vector<64x64xbf16>
    %14 = arith.extf %13 : vector<64x64xbf16> to vector<64x64xf32>
    %15 = arith.addf %12, %14 : vector<64x64xf32>
    %cst_11 = arith.constant dense<0xFF800000> : vector<64xf32>
    %16 = vector.multi_reduction <maximumf>, %15, %cst_11 [1] : vector<64x64xf32> to vector<64xf32>
    %17 = vector.shape_cast %16 : vector<64xf32> to vector<64x1xf32>
    %18 = vector.broadcast %17 : vector<64x1xf32> to vector<64x64xf32>
    %19 = arith.subf %15, %18 : vector<64x64xf32>
    %20 = math.exp %19 : vector<64x64xf32>
    %cst_12 = arith.constant dense<0.000000e+00> : vector<64xf32>
    %21 = vector.multi_reduction <add>, %20, %cst_12 [1] : vector<64x64xf32> to vector<64xf32>
    %22 = vector.shape_cast %21 : vector<64xf32> to vector<64x1xf32>
    %cst_13 = arith.constant 1.000000e+00 : f32
    %23 = vector.broadcast %cst_13 : f32 to vector<64x1xf32>
    %24 = arith.divf %23, %22 : vector<64x1xf32>
    %25 = vector.broadcast %24 : vector<64x1xf32> to vector<64x64xf32>
    %26 = arith.mulf %20, %25 : vector<64x64xf32>
    %27 = arith.truncf %26 : vector<64x64xf32> to vector<64x64xbf16>
    %28 = arith.truncf %2 : vector<64x128xf32> to vector<64x128xbf16>
    %cst_14 = arith.constant dense<0.000000e+00> : vector<64x128xf32>
    %29 = tpu.matmul %27, %28, %cst_14 {dimension_numbers = #tpu.dot_dimension_numbers<[1], [0], [0], [1], [0, 0, 1, 1], [], []>} : vector<64x64xbf16>, vector<64x128xbf16>, vector<64x128xf32> -> vector<64x128xf32>
    %c0_15 = arith.constant 0 : index
    %c0_16 = arith.constant 0 : index
    %30 = vector.load %arg6[%c0_15, %c0_16] : memref<1x128xf32, #tpu.memory_space<vmem>>, vector<1x128xf32>
    %31 = vector.broadcast %30 : vector<1x128xf32> to vector<64x128xf32>
    %32 = arith.addf %29, %31 : vector<64x128xf32>
    %c0_17 = arith.constant 0 : index
    %c0_18 = arith.constant 0 : index
    %33 = vector.load %arg7[%c0_17, %c0_18] : memref<64x128xf32, #tpu.memory_space<vmem>>, vector<64x128xf32>
    tpu.vector_store %arg7[%c0_17, %c0_18], %32 {strides = array<i32>} : memref<64x128xf32, #tpu.memory_space<vmem>>, vector<64x128xf32>,
    return
  }
  func.func @transform_0(%arg0: i32) -> (i32, i32) {
    %c0_i32 = arith.constant 0 : i32
    %c0_i32_0 = arith.constant 0 : i32
    %c0_i32_1 = arith.constant 0 : i32
    return %c0_i32, %c0_i32_0 : i32, i32
  }
  func.func @transform_1(%arg0: i32) -> (i32, i32) {
    %c0_i32 = arith.constant 0 : i32
    %c0_i32_0 = arith.constant 0 : i32
    %c0_i32_1 = arith.constant 0 : i32
    return %c0_i32, %c0_i32_0 : i32, i32
  }
  func.func @transform_2(%arg0: i32) -> (i32, i32) {
    %c0_i32 = arith.constant 0 : i32
    %c0_i32_0 = arith.constant 0 : i32
    %c0_i32_1 = arith.constant 0 : i32
    return %c0_i32, %c0_i32_0 : i32, i32
  }
  func.func @transform_3(%arg0: i32) -> (i32, i32) {
    %c0_i32 = arith.constant 0 : i32
    %c0_i32_0 = arith.constant 0 : i32
    return %arg0, %c0_i32 : i32, i32
  }
  func.func @transform_4(%arg0: i32) -> (i32, i32) {
    %c0_i32 = arith.constant 0 : i32
    %c0_i32_0 = arith.constant 0 : i32
    return %arg0, %c0_i32 : i32, i32
  }
  func.func @transform_5(%arg0: i32) -> (i32, i32) {
    %c0_i32 = arith.constant 0 : i32
    %c0_i32_0 = arith.constant 0 : i32
    %c0_i32_1 = arith.constant 0 : i32
    return %c0_i32, %c0_i32_0 : i32, i32
  }
  func.func @transform_6(%arg0: i32) -> (i32, i32) {
    %c0_i32 = arith.constant 0 : i32
    %c0_i32_0 = arith.constant 0 : i32
    return %arg0, %c0_i32 : i32, i32
  }
}

</mosaic_0001>

<llo_original>
// kernel: gat_forward.2
$region0: #{gat_forward.2}
  #allocation0 [shape = 'u32[]', space=smem, size = 0x4, offset = 0x4, fixed_abs, tag = 'smem constant byte address 0x4 - core index']
  #allocation1 [shape = 'u32[144,128]{1,0:T(1,128)}', space=vmem, size = 0x12000, scoped, tag = 'internal scratch']
  %s0 = inlined_call_operand.hbm [shape: bf16[64,16], index: 0, kind: input, shape index: {}]
  %s1 = inlined_call_operand.hbm [shape: bf16[16,32], index: 1, kind: input, shape index: {}]
  %s2 = inlined_call_operand.hbm [shape: f32[1,64], index: 2, kind: input, shape index: {}]
  %s3 = inlined_call_operand.hbm [shape: f32[64,1], index: 3, kind: input, shape index: {}]
  %s4 = inlined_call_operand.hbm [shape: bf16[64,64], index: 4, kind: input, shape index: {}]
  %s5 = inlined_call_operand.hbm [shape: f32[1,32], index: 5, kind: input, shape index: {}]
  %s6 = inlined_call_operand.hbm [shape: f32[64,32], index: 6, kind: output, shape index: {}]
  %s7 = sld [smem:[#allocation0]]
  $region58: #{gat_forward.2} parent=0
    _
  %s9 = ssub.s32 1, %s7
  %s10 = scalar_select 0, %s9, %s7
  $region1: #{gat_forward.2} parent=0
    #allocation2 [shape = 'u8[16384]{0}', space=vmem, size = 0x4000, scoped, tag = 'input window, operand 0, single buffered']
    #allocation3 [shape = 's32[1]{0}', space=sflag, size = 0x4, scoped, tag = 'scoped memory for gat_forward.2']
    #allocation4 [shape = 's32[1]{0}', space=sflag, size = 0x4, scoped, tag = 'scoped memory for gat_forward.2']
    #allocation5 [shape = 'u8[4096]{0}', space=vmem, size = 0x1000, scoped, tag = 'input window, operand 1, single buffered']
    #allocation6 [shape = 's32[1]{0}', space=sflag, size = 0x4, scoped, tag = 'scoped memory for gat_forward.2']
    #allocation7 [shape = 'u8[512]{0}', space=vmem, size = 0x400, scoped, tag = 'input window, operand 2, single buffered']
    #allocation8 [shape = 'u8[32768]{0}', space=vmem, size = 0x8000, scoped, tag = 'input window, operand 3, single buffered']
    #allocation9 [shape = 's32[1]{0}', space=sflag, size = 0x4, scoped, tag = 'scoped memory for gat_forward.2']
    #allocation10 [shape = 'u8[16384]{0}', space=vmem, size = 0x4000, scoped, tag = 'input window, operand 4, single buffered']
    #allocation11 [shape = 'u8[512]{0}', space=vmem, size = 0x400, scoped, tag = 'input window, operand 5, single buffered']
    #allocation12 [shape = 's32[1]{0}', space=sflag, size = 0x4, scoped, tag = 'scoped memory for gat_forward.2']
    #allocation13 [shape = 'u8[32768]{0}', space=vmem, size = 0x8000, scoped, tag = 'output window, operand 0, single buffered']
    %11 = vsyncpa [#allocation3], 0
    %12 = vsyncpa [#allocation6], 0
    %13 = vsyncpa [#allocation9], 0
    %14 = vsyncpa [#allocation12], 0
    %15 = vsyncpa [#allocation4], 0
    // Predicated region
    $region2: #{gat_forward.2} parent=1 // pred_check
      _
    $region3: #{gat_forward.2} parent=1 // pred_check_branch
      %17 = sbr.rel (0) target = $region5
    $region4: #{gat_forward.2} parent=1 // pred_region
      %s19 = ssub.s32 512, 512
      %20 = vsyncadd [#allocation3], %s19
      %s21 = sshll.u32 [#allocation2], 4
      %s22 = int_to_ptr.vmem [resolvable:$true] %s21
      %27 = dma.hbm_to_vmem [thread:$0]  %s0, 512, %s22, [#allocation3], 64, 64, 4
    $region5: #{gat_forward.2} parent=1 // pred_fallthru
      _
    // Predicated region
    $region6: #{gat_forward.2} parent=1 // pred_check
      _
    $region7: #{gat_forward.2} parent=1 // pred_check_branch
      %29 = sbr.rel (0) target = $region9
    $region8: #{gat_forward.2} parent=1 // pred_region
      %s31 = ssub.s32 128, 128
      %32 = vsyncadd [#allocation6], %s31
      %s33 = sshll.u32 [#allocation5], 4
      %s34 = int_to_ptr.vmem [resolvable:$true] %s33
      %39 = dma.hbm_to_vmem [thread:$0]  %s1, 128, %s34, [#allocation6], 64, 64, 4
    $region9: #{gat_forward.2} parent=1 // pred_fallthru
      _
    // Predicated region
    $region10: #{gat_forward.2} parent=1 // pred_check
      _
    $region11: #{gat_forward.2} parent=1 // pred_check_branch
      %41 = sbr.rel (0) target = $region13
    $region12: #{gat_forward.2} parent=1 // pred_region
      %s43 = ssub.s32 16, 16
      %44 = vsyncadd [#allocation6], %s43
      %s46 = sshll.u32 [#allocation7], 4
      %s47 = int_to_ptr.vmem [resolvable:$true] %s46
      %49 = dma.hbm_to_vmem [thread:$0]  %s2, 16, %s47, [#allocation6]
    $region13: #{gat_forward.2} parent=1 // pred_fallthru
      _
    // Predicated region
    $region14: #{gat_forward.2} parent=1 // pred_check
      _
    $region15: #{gat_forward.2} parent=1 // pred_check_branch
      %51 = sbr.rel (0) target = $region17
    $region16: #{gat_forward.2} parent=1 // pred_region
      %s53 = ssub.s32 1024, 1024
      %54 = vsyncadd [#allocation9], %s53
      %s55 = sshll.u32 [#allocation8], 4
      %s56 = int_to_ptr.vmem [resolvable:$true] %s55
      %61 = dma.hbm_to_vmem [thread:$0]  %s3, 1024, %s56, [#allocation9], 128, 128, 8
    $region17: #{gat_forward.2} parent=1 // pred_fallthru
      _
    // Predicated region
    $region18: #{gat_forward.2} parent=1 // pred_check
      _
    $region19: #{gat_forward.2} parent=1 // pred_check_branch
      %63 = sbr.rel (0) target = $region21
    $region20: #{gat_forward.2} parent=1 // pred_region
      %s65 = ssub.s32 512, 512
      %66 = vsyncadd [#allocation9], %s65
      %s67 = sshll.u32 [#allocation10], 4
      %s68 = int_to_ptr.vmem [resolvable:$true] %s67
      %73 = dma.hbm_to_vmem [thread:$0]  %s4, 512, %s68, [#allocation9], 64, 64, 4
    $region21: #{gat_forward.2} parent=1 // pred_fallthru
      _
    // Predicated region
    $region22: #{gat_forward.2} parent=1 // pred_check
      _
    $region23: #{gat_forward.2} parent=1 // pred_check_branch
      %75 = sbr.rel (0) target = $region25
    $region24: #{gat_forward.2} parent=1 // pred_region
      %s77 = ssub.s32 16, 16
      %78 = vsyncadd [#allocation12], %s77
      %s80 = sshll.u32 [#allocation11], 4
      %s81 = int_to_ptr.vmem [resolvable:$true] %s80
      %83 = dma.hbm_to_vmem [thread:$0]  %s5, 16, %s81, [#allocation12]
    $region25: #{gat_forward.2} parent=1 // pred_fallthru
      _
    // Predicated region
    $region26: #{gat_forward.2} parent=1 // pred_check
      _
    $region27: #{gat_forward.2} parent=1 // pred_check_branch
      %85 = sbr.rel (0) target = $region29
    $region28: #{gat_forward.2} parent=1 // pred_region
      %86 = dma.done [#allocation3], 512
    $region29: #{gat_forward.2} parent=1 // pred_fallthru
      _
    // Predicated region
    $region30: #{gat_forward.2} parent=1 // pred_check
      _
    $region31: #{gat_forward.2} parent=1 // pred_check_branch
      %88 = sbr.rel (0) target = $region33
    $region32: #{gat_forward.2} parent=1 // pred_region
      %89 = dma.done [#allocation6], 128
    $region33: #{gat_forward.2} parent=1 // pred_fallthru
      _
    // Predicated region
    $region34: #{gat_forward.2} parent=1 // pred_check
      _
    $region35: #{gat_forward.2} parent=1 // pred_check_branch
      %91 = sbr.rel (0) target = $region37
    $region36: #{gat_forward.2} parent=1 // pred_region
      %92 = dma.done [#allocation6], 16
    $region37: #{gat_forward.2} parent=1 // pred_fallthru
      _
    // Predicated region
    $region38: #{gat_forward.2} parent=1 // pred_check
      _
    $region39: #{gat_forward.2} parent=1 // pred_check_branch
      %94 = sbr.rel (0) target = $region41
    $region40: #{gat_forward.2} parent=1 // pred_region
      %95 = dma.done [#allocation9], 1024
    $region41: #{gat_forward.2} parent=1 // pred_fallthru
      _
    // Predicated region
    $region42: #{gat_forward.2} parent=1 // pred_check
      _
    $region43: #{gat_forward.2} parent=1 // pred_check_branch
      %97 = sbr.rel (0) target = $region45
    $region44: #{gat_forward.2} parent=1 // pred_region
      %98 = dma.done [#allocation9], 512
    $region45: #{gat_forward.2} parent=1 // pred_fallthru
      _
    // Predicated region
    $region46: #{gat_forward.2} parent=1 // pred_check
      _
    $region47: #{gat_forward.2} parent=1 // pred_check_branch
      %100 = sbr.rel (0) target = $region49
    $region48: #{gat_forward.2} parent=1 // pred_region
      %101 = dma.done [#allocation12], 16
    $region49: #{gat_forward.2} parent=1 // pred_fallthru
      _
    %v103 = vld [vmem:[#allocation2] sm:$0xf]
    %v104 = vld [vmem:[#allocation2 + $0x4] sm:$0xf]
    %v105 = vld [vmem:[#allocation2 + $0x8] sm:$0xf]
    %v106 = vld [vmem:[#allocation2 + $0xc] sm:$0xf]
    %v107 = vld [vmem:[#allocation2 + $0x10] sm:$0xf]
    %v108 = vld [vmem:[#allocation2 + $0x14] sm:$0xf]
    %v109 = vld [vmem:[#allocation2 + $0x18] sm:$0xf]
    %v110 = vld [vmem:[#allocation2 + $0x1c] sm:$0xf]
    %v111 = vld [vmem:[#allocation5] sm:$0xf]
    %v112 = vld [vmem:[#allocation5 + $0x4] sm:$0xf]
    %v121 = vunpack.c.l.b16 %v103
    %v122 = vunpack.c.l.b16 %v104
    %v123 = vunpack.c.l.b16 %v105
    %v124 = vunpack.c.l.b16 %v106
    %v125 = vunpack.c.l.b16 %v107
    %v126 = vunpack.c.l.b16 %v108
    %v127 = vunpack.c.l.b16 %v109
    %v128 = vunpack.c.l.b16 %v110
    %v129 = vpack.c.b16 %v122, %v121
    %v130 = vpack.c.b16 %v124, %v123
    %v131 = vpack.c.b16 %v126, %v125
    %v132 = vpack.c.b16 %v128, %v127
    %v135 = vunpack.c.l.b16 %v111
    %v136 = vunpack.c.l.b16 %v112
    %v137 = vpack.c.b16 %v136, %v135
    %vm139 = vcmask 130048
    %v141 = vsel %vm139, %v129, 0
    %v144 = vsel %vm139, %v130, 0
    %v147 = vsel %vm139, %v131, 0
    %v150 = vsel %vm139, %v132, 0
    %152 = vmatprep.subr.bf16.mxu0 0
    %153 = vmatpush1.bf16.msra.mxu0 %v137
    %154 = vmatprep.subr.bf16.mxu0 0
    %155 = vmatpush1.bf16.msra.mxu0 0
    %156 = vmatprep.subr.bf16.mxu0 0
    %157 = vmatpush1.bf16.msra.mxu0 0
    %158 = vmatprep.subr.bf16.mxu0 0
    %159 = vmatpush1.bf16.msra.mxu0 0
    %160 = vmatprep.subr.bf16.mxu0 0
    %161 = vmatpush1.bf16.msra.mxu0 0
    %162 = vmatprep.subr.bf16.mxu0 0
    %163 = vmatpush1.bf16.msra.mxu0 0
    %164 = vmatprep.subr.bf16.mxu0 0
    %165 = vmatpush1.bf16.msra.mxu0 0
    %166 = vmatprep.subr.bf16.mxu0 0
    %167 = vmatpush1.bf16.msra.mxu0 0
    %168 = vmatprep.subr.bf16.mxu0 0
    %169 = vmatpush1.bf16.msra.mxu0 0
    %170 = vmatprep.subr.bf16.mxu0 0
    %171 = vmatpush1.bf16.msra.mxu0 0
    %172 = vmatprep.subr.bf16.mxu0 0
    %173 = vmatpush1.bf16.msra.mxu0 0
    %174 = vmatprep.subr.bf16.mxu0 0
    %175 = vmatpush1.bf16.msra.mxu0 0
    %176 = vmatprep.subr.bf16.mxu0 0
    %177 = vmatpush1.bf16.msra.mxu0 0
    %178 = vmatprep.subr.bf16.mxu0 0
    %179 = vmatpush1.bf16.msra.mxu0 0
    %180 = vmatprep.subr.bf16.mxu0 0
    %181 = vmatpush1.bf16.msra.mxu0 0
    %182 = vmatprep.subr.bf16.mxu0 0
    %183 = vmatpush1.bf16.msra.mxu0 0
    %184 = vmatprep.mubr.bf16.mxu0 0
    %185 = vmatmul.mubr.bf16.gmra.mrb[0].mxu0 %v141
    %v186 = vpop.f32.mrb[0].mxu0
    %v187 = vadd.f32 0.0, %v186
    %v188 = vpop.f32.mrb[0].mxu0
    %v189 = vpop.f32.mrb[0].mxu0
    %v190 = vadd.f32 0.0, %v189
    %v191 = vpop.f32.mrb[0].mxu0
    %192 = vmatprep.mubr.bf16.mxu0 0
    %193 = vmatmul.mubr.bf16.gmra.mrb[0].mxu0 %v144
    %v194 = vpop.f32.mrb[0].mxu0
    %v195 = vadd.f32 0.0, %v194
    %v196 = vpop.f32.mrb[0].mxu0
    %v197 = vpop.f32.mrb[0].mxu0
    %v198 = vadd.f32 0.0, %v197
    %v199 = vpop.f32.mrb[0].mxu0
    %200 = vmatprep.mubr.bf16.mxu0 0
    %201 = vmatmul.mubr.bf16.gmra.mrb[0].mxu0 %v147
    %v202 = vpop.f32.mrb[0].mxu0
    %v203 = vadd.f32 0.0, %v202
    %v204 = vpop.f32.mrb[0].mxu0
    %v205 = vpop.f32.mrb[0].mxu0
    %v206 = vadd.f32 0.0, %v205
    %v207 = vpop.f32.mrb[0].mxu0
    %208 = vmatprep.mubr.bf16.mxu0 0
    %209 = vmatmul.mubr.bf16.gmra.mrb[0].mxu0 %v150
    %v210 = vpop.f32.mrb[0].mxu0
    %v211 = vadd.f32 0.0, %v210
    %v212 = vpop.f32.mrb[0].mxu0
    %v213 = vpop.f32.mrb[0].mxu0
    %v214 = vadd.f32 0.0, %v213
    %v215 = vpop.f32.mrb[0].mxu0
    %216 = vdwg.mxu0
    %v217 = vld [vmem:[#allocation8] sm:$0xff]
    %v218 = vld [vmem:[#allocation8 + $0x8] sm:$0xff]
    %v219 = vld [vmem:[#allocation8 + $0x10] sm:$0xff]
    %v220 = vld [vmem:[#allocation8 + $0x18] sm:$0xff]
    %v221 = vld [vmem:[#allocation8 + $0x20] sm:$0xff]
    %v222 = vld [vmem:[#allocation8 + $0x28] sm:$0xff]
    %v223 = vld [vmem:[#allocation8 + $0x30] sm:$0xff]
    %v224 = vld [vmem:[#allocation8 + $0x38] sm:$0xff]
    %v225 = vld [vmem:[#allocation7] sm:$0x1]
    %227 = vset.pattern.permute.xlu0 0
    %228 = vperm.xlu0 %227, %v217
    %v229 = vpop.permute.xlu0 %228
    %232 = vset.pattern.permute.xlu0 0
    %233 = vperm.xlu0 %232, %v218
    %v234 = vpop.permute.xlu0 %233
    %237 = vset.pattern.permute.xlu0 0
    %238 = vperm.xlu0 %237, %v219
    %v239 = vpop.permute.xlu0 %238
    %242 = vset.pattern.permute.xlu0 0
    %243 = vperm.xlu0 %242, %v220
    %v244 = vpop.permute.xlu0 %243
    %247 = vset.pattern.permute.xlu0 0
    %248 = vperm.xlu0 %247, %v221
    %v249 = vpop.permute.xlu0 %248
    %252 = vset.pattern.permute.xlu0 0
    %253 = vperm.xlu0 %252, %v222
    %v254 = vpop.permute.xlu0 %253
    %257 = vset.pattern.permute.xlu0 0
    %258 = vperm.xlu0 %257, %v223
    %v259 = vpop.permute.xlu0 %258
    %262 = vset.pattern.permute.xlu0 0
    %263 = vperm.xlu0 %262, %v224
    %v264 = vpop.permute.xlu0 %263
    %v267 = vlaneseq
    %v268 = vshrl.u32 %v267, 7
    %v269 = vsub.s32 0, %v268
    %v270 = vrot.slane %v225, %v269
    %v272 = vadd.f32 %v229, %v270
    %v273 = vadd.f32 %v234, %v270
    %v274 = vadd.f32 %v239, %v270
    %v275 = vadd.f32 %v244, %v270
    %v276 = vadd.f32 %v249, %v270
    %v277 = vadd.f32 %v254, %v270
    %v278 = vadd.f32 %v259, %v270
    %v279 = vadd.f32 %v264, %v270
    %vm280 = vcmp.gt.f32.partialorder %v272, 0.0
    %vm281 = vcmp.gt.f32.partialorder %v273, 0.0
    %vm282 = vcmp.gt.f32.partialorder %v274, 0.0
    %vm283 = vcmp.gt.f32.partialorder %v275, 0.0
    %vm284 = vcmp.gt.f32.partialorder %v276, 0.0
    %vm285 = vcmp.gt.f32.partialorder %v277, 0.0
    %vm286 = vcmp.gt.f32.partialorder %v278, 0.0
    %vm287 = vcmp.gt.f32.partialorder %v279, 0.0
    %v288 = vmul.f32 %v272, 0.2
    %v289 = vmul.f32 %v273, 0.2
    %v290 = vmul.f32 %v274, 0.2
    %v291 = vmul.f32 %v275, 0.2
    %v292 = vmul.f32 %v276, 0.2
    %v293 = vmul.f32 %v277, 0.2
    %v294 = vmul.f32 %v278, 0.2
    %v295 = vmul.f32 %v279, 0.2
    %v296 = vsel %vm280, %v272, %v288
    %v297 = vsel %vm281, %v273, %v289
    %v298 = vsel %vm282, %v274, %v290
    %v299 = vsel %vm283, %v275, %v291
    %v300 = vsel %vm284, %v276, %v292
    %v301 = vsel %vm285, %v277, %v293
    %v302 = vsel %vm286, %v278, %v294
    %v303 = vsel %vm287, %v279, %v295
    %v304 = vld [vmem:[#allocation10] sm:$0xf]
    %v305 = vld [vmem:[#allocation10 + $0x4] sm:$0xf]
    %v306 = vld [vmem:[#allocation10 + $0x8] sm:$0xf]
    %v307 = vld [vmem:[#allocation10 + $0xc] sm:$0xf]
    %v308 = vld [vmem:[#allocation10 + $0x10] sm:$0xf]
    %v309 = vld [vmem:[#allocation10 + $0x14] sm:$0xf]
    %v310 = vld [vmem:[#allocation10 + $0x18] sm:$0xf]
    %v311 = vld [vmem:[#allocation10 + $0x1c] sm:$0xf]
    %v312 = vunpack.c.l.bf16 %v304
    %v313 = vunpack.c.l.bf16 %v305
    %v314 = vunpack.c.l.bf16 %v306
    %v315 = vunpack.c.l.bf16 %v307
    %v316 = vunpack.c.l.bf16 %v308
    %v317 = vunpack.c.l.bf16 %v309
    %v318 = vunpack.c.l.bf16 %v310
    %v319 = vunpack.c.l.bf16 %v311
    %v320 = vadd.f32 %v296, %v312
    %v321 = vadd.f32 %v297, %v313
    %v322 = vadd.f32 %v298, %v314
    %v323 = vadd.f32 %v299, %v315
    %v324 = vadd.f32 %v300, %v316
    %v325 = vadd.f32 %v301, %v317
    %v326 = vadd.f32 %v302, %v318
    %v327 = vadd.f32 %v303, %v319
    %vm328 = vcmask 523264
    %v329 = vsel %vm328, %v320, -inf
    %330 = vmax.xlane.f32.xlu0 %v329
    %v331 = vpop.xlane.xlu0 %330
    %v332 = vsel %vm328, %v321, -inf
    %333 = vmax.xlane.f32.xlu0 %v332
    %v334 = vpop.xlane.xlu0 %333
    %v335 = vsel %vm328, %v322, -inf
    %336 = vmax.xlane.f32.xlu0 %v335
    %v337 = vpop.xlane.xlu0 %336
    %v338 = vsel %vm328, %v323, -inf
    %339 = vmax.xlane.f32.xlu0 %v338
    %v340 = vpop.xlane.xlu0 %339
    %v341 = vsel %vm328, %v324, -inf
    %342 = vmax.xlane.f32.xlu0 %v341
    %v343 = vpop.xlane.xlu0 %342
    %v344 = vsel %vm328, %v325, -inf
    %345 = vmax.xlane.f32.xlu0 %v344
    %v346 = vpop.xlane.xlu0 %345
    %v347 = vsel %vm328, %v326, -inf
    %348 = vmax.xlane.f32.xlu0 %v347
    %v349 = vpop.xlane.xlu0 %348
    %v350 = vsel %vm328, %v327, -inf
    %351 = vmax.xlane.f32.xlu0 %v350
    %v352 = vpop.xlane.xlu0 %351
    %v353 = vsub.f32 %v320, %v331
    %v354 = vsub.f32 %v321, %v334
    %v355 = vsub.f32 %v322, %v337
    %v356 = vsub.f32 %v323, %v340
    %v357 = vsub.f32 %v324, %v343
    %v358 = vsub.f32 %v325, %v346
    %v359 = vsub.f32 %v326, %v349
    %v360 = vsub.f32 %v327, %v352
    %v361 = vmul.f32 %v353, 1.442695
    %v362 = vpow.pop %v361
    %v363 = vmul.f32 %v354, 1.442695
    %v364 = vpow.pop %v363
    %v365 = vmul.f32 %v355, 1.442695
    %v366 = vpow.pop %v365
    %v367 = vmul.f32 %v356, 1.442695
    %v368 = vpow.pop %v367
    %v369 = vmul.f32 %v357, 1.442695
    %v370 = vpow.pop %v369
    %v371 = vmul.f32 %v358, 1.442695
    %v372 = vpow.pop %v371
    %v373 = vmul.f32 %v359, 1.442695
    %v374 = vpow.pop %v373
    %v375 = vmul.f32 %v360, 1.442695
    %v376 = vpow.pop %v375
    %v377 = vsel %vm328, %v362, 0.0
    %378 = vadd.xlane.f32.xlu0 %v377
    %v379 = vpop.xlane.xlu0 %378
    %v380 = vsel %vm328, %v364, 0.0
    %381 = vadd.xlane.f32.xlu0 %v380
    %v382 = vpop.xlane.xlu0 %381
    %v383 = vsel %vm328, %v366, 0.0
    %384 = vadd.xlane.f32.xlu0 %v383
    %v385 = vpop.xlane.xlu0 %384
    %v386 = vsel %vm328, %v368, 0.0
    %387 = vadd.xlane.f32.xlu0 %v386
    %v388 = vpop.xlane.xlu0 %387
    %v389 = vsel %vm328, %v370, 0.0
    %390 = vadd.xlane.f32.xlu0 %v389
    %v391 = vpop.xlane.xlu0 %390
    %v392 = vsel %vm328, %v372, 0.0
    %393 = vadd.xlane.f32.xlu0 %v392
    %v394 = vpop.xlane.xlu0 %393
    %v395 = vsel %vm328, %v374, 0.0
    %396 = vadd.xlane.f32.xlu0 %v395
    %v397 = vpop.xlane.xlu0 %396
    %v398 = vsel %vm328, %v376, 0.0
    %399 = vadd.xlane.f32.xlu0 %v398
    %v400 = vpop.xlane.xlu0 %399
    %v401 = vrcp.pop %v379
    %v402 = vmul.f32 1.0, %v401
    %v403 = vrcp.pop %v382
    %v404 = vmul.f32 1.0, %v403
    %v405 = vrcp.pop %v385
    %v406 = vmul.f32 1.0, %v405
    %v407 = vrcp.pop %v388
    %v408 = vmul.f32 1.0, %v407
    %v409 = vrcp.pop %v391
    %v410 = vmul.f32 1.0, %v409
    %v411 = vrcp.pop %v394
    %v412 = vmul.f32 1.0, %v411
    %v413 = vrcp.pop %v397
    %v414 = vmul.f32 1.0, %v413
    %v415 = vrcp.pop %v400
    %v416 = vmul.f32 1.0, %v415
    %v417 = vmul.f32 %v362, %v402
    %v418 = vmul.f32 %v364, %v404
    %v419 = vmul.f32 %v366, %v406
    %v420 = vmul.f32 %v368, %v408
    %v421 = vmul.f32 %v370, %v410
    %v422 = vmul.f32 %v372, %v412
    %v423 = vmul.f32 %v374, %v414
    %v424 = vmul.f32 %v376, %v416
    %v425 = vpack.c.bf16 %v418, %v417
    %v426 = vpack.c.bf16 %v420, %v419
    %v427 = vpack.c.bf16 %v422, %v421
    %v428 = vpack.c.bf16 %v424, %v423
    %v429 = vpack.c.bf16 %v190, %v187
    %v430 = vpack.c.bf16 %v198, %v195
    %v431 = vpack.c.bf16 %v206, %v203
    %v432 = vpack.c.bf16 %v214, %v211
    %v433 = vld [vmem:[#allocation11] sm:$0x1]
    %v435 = vlaneseq
    %v436 = vshrl.u32 %v435, 7
    %v437 = vsub.s32 0, %v436
    %v438 = vrot.slane %v433, %v437
    %v441 = vsel %vm328, %v425, 0
    %v444 = vsel %vm328, %v426, 0
    %v447 = vsel %vm328, %v427, 0
    %v450 = vsel %vm328, %v428, 0
    %452 = vmatprep.subr.bf16.mxu0 0
    %453 = vmatpush1.bf16.msra.mxu0 %v429
    %454 = vmatprep.subr.bf16.mxu0 0
    %455 = vmatpush1.bf16.msra.mxu0 %v430
    %456 = vmatprep.subr.bf16.mxu0 0
    %457 = vmatpush1.bf16.msra.mxu0 %v431
    %458 = vmatprep.subr.bf16.mxu0 0
    %459 = vmatpush1.bf16.msra.mxu0 %v432
    %460 = vmatprep.subr.bf16.mxu0 0
    %461 = vmatpush1.bf16.msra.mxu0 0
    %462 = vmatprep.subr.bf16.mxu0 0
    %463 = vmatpush1.bf16.msra.mxu0 0
    %464 = vmatprep.subr.bf16.mxu0 0
    %465 = vmatpush1.bf16.msra.mxu0 0
    %466 = vmatprep.subr.bf16.mxu0 0
    %467 = vmatpush1.bf16.msra.mxu0 0
    %468 = vmatprep.subr.bf16.mxu0 0
    %469 = vmatpush1.bf16.msra.mxu0 0
    %470 = vmatprep.subr.bf16.mxu0 0
    %471 = vmatpush1.bf16.msra.mxu0 0
    %472 = vmatprep.subr.bf16.mxu0 0
    %473 = vmatpush1.bf16.msra.mxu0 0
    %474 = vmatprep.subr.bf16.mxu0 0
    %475 = vmatpush1.bf16.msra.mxu0 0
    %476 = vmatprep.subr.bf16.mxu0 0
    %477 = vmatpush1.bf16.msra.mxu0 0
    %478 = vmatprep.subr.bf16.mxu0 0
    %479 = vmatpush1.bf16.msra.mxu0 0
    %480 = vmatprep.subr.bf16.mxu0 0
    %481 = vmatpush1.bf16.msra.mxu0 0
    %482 = vmatprep.subr.bf16.mxu0 0
    %483 = vmatpush1.bf16.msra.mxu0 0
    %484 = vmatprep.mubr.bf16.mxu0 0
    %485 = vmatmul.mubr.bf16.gmra.mrb[0].mxu0 %v441
    %v486 = vpop.f32.mrb[0].mxu0
    %v487 = vadd.f32 %v438, %v486
    %v488 = vpop.f32.mrb[0].mxu0
    %v489 = vpop.f32.mrb[0].mxu0
    %v490 = vadd.f32 %v438, %v489
    %v491 = vpop.f32.mrb[0].mxu0
    %492 = vmatprep.mubr.bf16.mxu0 0
    %493 = vmatmul.mubr.bf16.gmra.mrb[0].mxu0 %v444
    %v494 = vpop.f32.mrb[0].mxu0
    %v495 = vadd.f32 %v438, %v494
    %v496 = vpop.f32.mrb[0].mxu0
    %v497 = vpop.f32.mrb[0].mxu0
    %v498 = vadd.f32 %v438, %v497
    %v499 = vpop.f32.mrb[0].mxu0
    %500 = vmatprep.mubr.bf16.mxu0 0
    %501 = vmatmul.mubr.bf16.gmra.mrb[0].mxu0 %v447
    %v502 = vpop.f32.mrb[0].mxu0
    %v503 = vadd.f32 %v438, %v502
    %v504 = vpop.f32.mrb[0].mxu0
    %v505 = vpop.f32.mrb[0].mxu0
    %v506 = vadd.f32 %v438, %v505
    %v507 = vpop.f32.mrb[0].mxu0
    %508 = vmatprep.mubr.bf16.mxu0 0
    %509 = vmatmul.mubr.bf16.gmra.mrb[0].mxu0 %v450
    %v510 = vpop.f32.mrb[0].mxu0
    %v511 = vadd.f32 %v438, %v510
    %v512 = vpop.f32.mrb[0].mxu0
    %v513 = vpop.f32.mrb[0].mxu0
    %v514 = vadd.f32 %v438, %v513
    %v515 = vpop.f32.mrb[0].mxu0
    %516 = vdwg.mxu0
    %v517 = vmax.f32 %v487, 0.0
    %v518 = vmax.f32 %v490, 0.0
    %v519 = vmax.f32 %v495, 0.0
    %v520 = vmax.f32 %v498, 0.0
    %v521 = vmax.f32 %v503, 0.0
    %v522 = vmax.f32 %v506, 0.0
    %v523 = vmax.f32 %v511, 0.0
    %v524 = vmax.f32 %v514, 0.0
    %vm525 = vcmask 261120
    %526 = vst.msk [vmem:[#allocation13] sm:$0xff] %vm525, %v517
    %527 = vst.msk [vmem:[#allocation13 + $0x8] sm:$0xff] %vm525, %v518
    %528 = vst.msk [vmem:[#allocation13 + $0x10] sm:$0xff] %vm525, %v519
    %529 = vst.msk [vmem:[#allocation13 + $0x18] sm:$0xff] %vm525, %v520
    %530 = vst.msk [vmem:[#allocation13 + $0x20] sm:$0xff] %vm525, %v521
    %531 = vst.msk [vmem:[#allocation13 + $0x28] sm:$0xff] %vm525, %v522
    %532 = vst.msk [vmem:[#allocation13 + $0x30] sm:$0xff] %vm525, %v523
    %533 = vst.msk [vmem:[#allocation13 + $0x38] sm:$0xff] %vm525, %v524
    // Predicated region
    $region50: #{gat_forward.2} parent=1 // pred_check
      _
    $region51: #{gat_forward.2} parent=1 // pred_check_branch
      %535 = sbr.rel (0) target = $region53
    $region52: #{gat_forward.2} parent=1 // pred_region
      %s537 = ssub.s32 1024, 1024
      %538 = vsyncadd [#allocation4], %s537
      %s539 = sshll.u32 [#allocation13], 4
      %s540 = int_to_ptr.vmem [resolvable:$true] %s539
      %545 = dma.vmem_to_hbm [thread:$0]  %s540, 1024, %s6, [#allocation4], 128, 128, 8
    $region53: #{gat_forward.2} parent=1 // pred_fallthru
      _
    // Predicated region
    $region54: #{gat_forward.2} parent=1 // pred_check
      _
    $region55: #{gat_forward.2} parent=1 // pred_check_branch
      %547 = sbr.rel (0) target = $region57
    $region56: #{gat_forward.2} parent=1 // pred_region
      %548 = dma.done [#allocation4], 1024
    $region57: #{gat_forward.2} parent=1 // pred_fallthru
      _
    %549 = vsyncpa [#allocation3], 1
    %550 = vsyncpa [#allocation6], 1
    %551 = vsyncpa [#allocation9], 1
    %552 = vsyncpa [#allocation12], 1
    %553 = vsyncpa [#allocation4], 1

// kernel: gat_forward.3
$region0: #{gat_forward.3}
  #allocation0 [shape = 'u32[]', space=smem, size = 0x4, offset = 0x4, fixed_abs, tag = 'smem constant byte address 0x4 - core index']
  #allocation1 [shape = 'u32[144,128]{1,0:T(1,128)}', space=vmem, size = 0x12000, scoped, tag = 'internal scratch']
  %s0 = inlined_call_operand.hbm [shape: bf16[64,32], index: 0, kind: input, shape index: {}]
  %s1 = inlined_call_operand.hbm [shape: bf16[32,128], index: 1, kind: input, shape index: {}]
  %s2 = inlined_call_operand.hbm [shape: f32[1,64], index: 2, kind: input, shape index: {}]
  %s3 = inlined_call_operand.hbm [shape: f32[64,1], index: 3, kind: input, shape index: {}]
  %s4 = inlined_call_operand.hbm [shape: bf16[64,64], index: 4, kind: input, shape index: {}]
  %s5 = inlined_call_operand.hbm [shape: f32[1,128], index: 5, kind: input, shape index: {}]
  %s6 = inlined_call_operand.hbm [shape: f32[64,128], index: 6, kind: output, shape index: {}]
  %s7 = sld [smem:[#allocation0]]
  $region58: #{gat_forward.3} parent=0
    _
  %s9 = ssub.s32 1, %s7
  %s10 = scalar_select 0, %s9, %s7
  $region1: #{gat_forward.3} parent=0
    #allocation2 [shape = 'u8[16384]{0}', space=vmem, size = 0x4000, scoped, tag = 'input window, operand 0, single buffered']
    #allocation3 [shape = 's32[1]{0}', space=sflag, size = 0x4, scoped, tag = 'scoped memory for gat_forward.3']
    #allocation4 [shape = 's32[1]{0}', space=sflag, size = 0x4, scoped, tag = 'scoped memory for gat_forward.3']
    #allocation5 [shape = 'u8[8192]{0}', space=vmem, size = 0x2000, scoped, tag = 'input window, operand 1, single buffered']
    #allocation6 [shape = 's32[1]{0}', space=sflag, size = 0x4, scoped, tag = 'scoped memory for gat_forward.3']
    #allocation7 [shape = 'u8[512]{0}', space=vmem, size = 0x400, scoped, tag = 'input window, operand 2, single buffered']
    #allocation8 [shape = 'u8[32768]{0}', space=vmem, size = 0x8000, scoped, tag = 'input window, operand 3, single buffered']
    #allocation9 [shape = 's32[1]{0}', space=sflag, size = 0x4, scoped, tag = 'scoped memory for gat_forward.3']
    #allocation10 [shape = 'u8[16384]{0}', space=vmem, size = 0x4000, scoped, tag = 'input window, operand 4, single buffered']
    #allocation11 [shape = 'u8[512]{0}', space=vmem, size = 0x400, scoped, tag = 'input window, operand 5, single buffered']
    #allocation12 [shape = 's32[1]{0}', space=sflag, size = 0x4, scoped, tag = 'scoped memory for gat_forward.3']
    #allocation13 [shape = 'u8[32768]{0}', space=vmem, size = 0x8000, scoped, tag = 'output window, operand 0, single buffered']
    %11 = vsyncpa [#allocation3], 0
    %12 = vsyncpa [#allocation6], 0
    %13 = vsyncpa [#allocation9], 0
    %14 = vsyncpa [#allocation12], 0
    %15 = vsyncpa [#allocation4], 0
    // Predicated region
    $region2: #{gat_forward.3} parent=1 // pred_check
      _
    $region3: #{gat_forward.3} parent=1 // pred_check_branch
      %17 = sbr.rel (0) target = $region5
    $region4: #{gat_forward.3} parent=1 // pred_region
      %s19 = ssub.s32 512, 512
      %20 = vsyncadd [#allocation3], %s19
      %s21 = sshll.u32 [#allocation2], 4
      %s22 = int_to_ptr.vmem [resolvable:$true] %s21
      %27 = dma.hbm_to_vmem [thread:$0]  %s0, 512, %s22, [#allocation3], 64, 64, 4
    $region5: #{gat_forward.3} parent=1 // pred_fallthru
      _
    // Predicated region
    $region6: #{gat_forward.3} parent=1 // pred_check
      _
    $region7: #{gat_forward.3} parent=1 // pred_check_branch
      %29 = sbr.rel (0) target = $region9
    $region8: #{gat_forward.3} parent=1 // pred_region
      %s31 = ssub.s32 256, 256
      %32 = vsyncadd [#allocation6], %s31
      %s33 = sshll.u32 [#allocation5], 4
      %s34 = int_to_ptr.vmem [resolvable:$true] %s33
      %39 = dma.hbm_to_vmem [thread:$0]  %s1, 256, %s34, [#allocation6], 64, 64, 4
    $region9: #{gat_forward.3} parent=1 // pred_fallthru
      _
    // Predicated region
    $region10: #{gat_forward.3} parent=1 // pred_check
      _
    $region11: #{gat_forward.3} parent=1 // pred_check_branch
      %41 = sbr.rel (0) target = $region13
    $region12: #{gat_forward.3} parent=1 // pred_region
      %s43 = ssub.s32 16, 16
      %44 = vsyncadd [#allocation6], %s43
      %s46 = sshll.u32 [#allocation7], 4
      %s47 = int_to_ptr.vmem [resolvable:$true] %s46
      %49 = dma.hbm_to_vmem [thread:$0]  %s2, 16, %s47, [#allocation6]
    $region13: #{gat_forward.3} parent=1 // pred_fallthru
      _
    // Predicated region
    $region14: #{gat_forward.3} parent=1 // pred_check
      _
    $region15: #{gat_forward.3} parent=1 // pred_check_branch
      %51 = sbr.rel (0) target = $region17
    $region16: #{gat_forward.3} parent=1 // pred_region
      %s53 = ssub.s32 1024, 1024
      %54 = vsyncadd [#allocation9], %s53
      %s55 = sshll.u32 [#allocation8], 4
      %s56 = int_to_ptr.vmem [resolvable:$true] %s55
      %61 = dma.hbm_to_vmem [thread:$0]  %s3, 1024, %s56, [#allocation9], 128, 128, 8
    $region17: #{gat_forward.3} parent=1 // pred_fallthru
      _
    // Predicated region
    $region18: #{gat_forward.3} parent=1 // pred_check
      _
    $region19: #{gat_forward.3} parent=1 // pred_check_branch
      %63 = sbr.rel (0) target = $region21
    $region20: #{gat_forward.3} parent=1 // pred_region
      %s65 = ssub.s32 512, 512
      %66 = vsyncadd [#allocation9], %s65
      %s67 = sshll.u32 [#allocation10], 4
      %s68 = int_to_ptr.vmem [resolvable:$true] %s67
      %73 = dma.hbm_to_vmem [thread:$0]  %s4, 512, %s68, [#allocation9], 64, 64, 4
    $region21: #{gat_forward.3} parent=1 // pred_fallthru
      _
    // Predicated region
    $region22: #{gat_forward.3} parent=1 // pred_check
      _
    $region23: #{gat_forward.3} parent=1 // pred_check_branch
      %75 = sbr.rel (0) target = $region25
    $region24: #{gat_forward.3} parent=1 // pred_region
      %s77 = ssub.s32 16, 16
      %78 = vsyncadd [#allocation12], %s77
      %s80 = sshll.u32 [#allocation11], 4
      %s81 = int_to_ptr.vmem [resolvable:$true] %s80
      %83 = dma.hbm_to_vmem [thread:$0]  %s5, 16, %s81, [#allocation12]
    $region25: #{gat_forward.3} parent=1 // pred_fallthru
      _
    // Predicated region
    $region26: #{gat_forward.3} parent=1 // pred_check
      _
    $region27: #{gat_forward.3} parent=1 // pred_check_branch
      %85 = sbr.rel (0) target = $region29
    $region28: #{gat_forward.3} parent=1 // pred_region
      %86 = dma.done [#allocation3], 512
    $region29: #{gat_forward.3} parent=1 // pred_fallthru
      _
    // Predicated region
    $region30: #{gat_forward.3} parent=1 // pred_check
      _
    $region31: #{gat_forward.3} parent=1 // pred_check_branch
      %88 = sbr.rel (0) target = $region33
    $region32: #{gat_forward.3} parent=1 // pred_region
      %89 = dma.done [#allocation6], 256
    $region33: #{gat_forward.3} parent=1 // pred_fallthru
      _
    // Predicated region
    $region34: #{gat_forward.3} parent=1 // pred_check
      _
    $region35: #{gat_forward.3} parent=1 // pred_check_branch
      %91 = sbr.rel (0) target = $region37
    $region36: #{gat_forward.3} parent=1 // pred_region
      %92 = dma.done [#allocation6], 16
    $region37: #{gat_forward.3} parent=1 // pred_fallthru
      _
    // Predicated region
    $region38: #{gat_forward.3} parent=1 // pred_check
      _
    $region39: #{gat_forward.3} parent=1 // pred_check_branch
      %94 = sbr.rel (0) target = $region41
    $region40: #{gat_forward.3} parent=1 // pred_region
      %95 = dma.done [#allocation9], 1024
    $region41: #{gat_forward.3} parent=1 // pred_fallthru
      _
    // Predicated region
    $region42: #{gat_forward.3} parent=1 // pred_check
      _
    $region43: #{gat_forward.3} parent=1 // pred_check_branch
      %97 = sbr.rel (0) target = $region45
    $region44: #{gat_forward.3} parent=1 // pred_region
      %98 = dma.done [#allocation9], 512
    $region45: #{gat_forward.3} parent=1 // pred_fallthru
      _
    // Predicated region
    $region46: #{gat_forward.3} parent=1 // pred_check
      _
    $region47: #{gat_forward.3} parent=1 // pred_check_branch
      %100 = sbr.rel (0) target = $region49
    $region48: #{gat_forward.3} parent=1 // pred_region
      %101 = dma.done [#allocation12], 16
    $region49: #{gat_forward.3} parent=1 // pred_fallthru
      _
    %v103 = vld [vmem:[#allocation2] sm:$0xf]
    %v104 = vld [vmem:[#allocation2 + $0x4] sm:$0xf]
    %v105 = vld [vmem:[#allocation2 + $0x8] sm:$0xf]
    %v106 = vld [vmem:[#allocation2 + $0xc] sm:$0xf]
    %v107 = vld [vmem:[#allocation2 + $0x10] sm:$0xf]
    %v108 = vld [vmem:[#allocation2 + $0x14] sm:$0xf]
    %v109 = vld [vmem:[#allocation2 + $0x18] sm:$0xf]
    %v110 = vld [vmem:[#allocation2 + $0x1c] sm:$0xf]
    %v111 = vld [vmem:[#allocation5] sm:$0xf]
    %v112 = vld [vmem:[#allocation5 + $0x4] sm:$0xf]
    %v113 = vld [vmem:[#allocation5 + $0x8] sm:$0xf]
    %v114 = vld [vmem:[#allocation5 + $0xc] sm:$0xf]
    %v123 = vunpack.c.l.b16 %v103
    %v124 = vunpack.c.l.b16 %v104
    %v125 = vunpack.c.l.b16 %v105
    %v126 = vunpack.c.l.b16 %v106
    %v127 = vunpack.c.l.b16 %v107
    %v128 = vunpack.c.l.b16 %v108
    %v129 = vunpack.c.l.b16 %v109
    %v130 = vunpack.c.l.b16 %v110
    %v131 = vpack.c.b16 %v124, %v123
    %v132 = vpack.c.b16 %v126, %v125
    %v133 = vpack.c.b16 %v128, %v127
    %v134 = vpack.c.b16 %v130, %v129
    %v139 = vunpack.c.l.b16 %v111
    %v140 = vunpack.c.l.b16 %v112
    %v141 = vunpack.c.l.b16 %v113
    %v142 = vunpack.c.l.b16 %v114
    %v143 = vpack.c.b16 %v140, %v139
    %v144 = vpack.c.b16 %v142, %v141
    %vm147 = vcmask 261120
    %v149 = vsel %vm147, %v131, 0
    %v152 = vsel %vm147, %v132, 0
    %v155 = vsel %vm147, %v133, 0
    %v158 = vsel %vm147, %v134, 0
    %160 = vmatprep.subr.bf16.mxu0 0
    %161 = vmatpush1.bf16.msra.mxu0 %v143
    %162 = vmatprep.subr.bf16.mxu0 0
    %163 = vmatpush1.bf16.msra.mxu0 %v144
    %164 = vmatprep.subr.bf16.mxu0 0
    %165 = vmatpush1.bf16.msra.mxu0 0
    %166 = vmatprep.subr.bf16.mxu0 0
    %167 = vmatpush1.bf16.msra.mxu0 0
    %168 = vmatprep.subr.bf16.mxu0 0
    %169 = vmatpush1.bf16.msra.mxu0 0
    %170 = vmatprep.subr.bf16.mxu0 0
    %171 = vmatpush1.bf16.msra.mxu0 0
    %172 = vmatprep.subr.bf16.mxu0 0
    %173 = vmatpush1.bf16.msra.mxu0 0
    %174 = vmatprep.subr.bf16.mxu0 0
    %175 = vmatpush1.bf16.msra.mxu0 0
    %176 = vmatprep.subr.bf16.mxu0 0
    %177 = vmatpush1.bf16.msra.mxu0 0
    %178 = vmatprep.subr.bf16.mxu0 0
    %179 = vmatpush1.bf16.msra.mxu0 0
    %180 = vmatprep.subr.bf16.mxu0 0
    %181 = vmatpush1.bf16.msra.mxu0 0
    %182 = vmatprep.subr.bf16.mxu0 0
    %183 = vmatpush1.bf16.msra.mxu0 0
    %184 = vmatprep.subr.bf16.mxu0 0
    %185 = vmatpush1.bf16.msra.mxu0 0
    %186 = vmatprep.subr.bf16.mxu0 0
    %187 = vmatpush1.bf16.msra.mxu0 0
    %188 = vmatprep.subr.bf16.mxu0 0
    %189 = vmatpush1.bf16.msra.mxu0 0
    %190 = vmatprep.subr.bf16.mxu0 0
    %191 = vmatpush1.bf16.msra.mxu0 0
    %192 = vmatprep.mubr.bf16.mxu0 0
    %193 = vmatmul.mubr.bf16.gmra.mrb[0].mxu0 %v149
    %v194 = vpop.f32.mrb[0].mxu0
    %v195 = vadd.f32 0.0, %v194
    %v196 = vpop.f32.mrb[0].mxu0
    %v197 = vpop.f32.mrb[0].mxu0
    %v198 = vadd.f32 0.0, %v197
    %v199 = vpop.f32.mrb[0].mxu0
    %200 = vmatprep.mubr.bf16.mxu0 0
    %201 = vmatmul.mubr.bf16.gmra.mrb[0].mxu0 %v152
    %v202 = vpop.f32.mrb[0].mxu0
    %v203 = vadd.f32 0.0, %v202
    %v204 = vpop.f32.mrb[0].mxu0
    %v205 = vpop.f32.mrb[0].mxu0
    %v206 = vadd.f32 0.0, %v205
    %v207 = vpop.f32.mrb[0].mxu0
    %208 = vmatprep.mubr.bf16.mxu0 0
    %209 = vmatmul.mubr.bf16.gmra.mrb[0].mxu0 %v155
    %v210 = vpop.f32.mrb[0].mxu0
    %v211 = vadd.f32 0.0, %v210
    %v212 = vpop.f32.mrb[0].mxu0
    %v213 = vpop.f32.mrb[0].mxu0
    %v214 = vadd.f32 0.0, %v213
    %v215 = vpop.f32.mrb[0].mxu0
    %216 = vmatprep.mubr.bf16.mxu0 0
    %217 = vmatmul.mubr.bf16.gmra.mrb[0].mxu0 %v158
    %v218 = vpop.f32.mrb[0].mxu0
    %v219 = vadd.f32 0.0, %v218
    %v220 = vpop.f32.mrb[0].mxu0
    %v221 = vpop.f32.mrb[0].mxu0
    %v222 = vadd.f32 0.0, %v221
    %v223 = vpop.f32.mrb[0].mxu0
    %224 = vdwg.mxu0
    %v225 = vld [vmem:[#allocation8] sm:$0xff]
    %v226 = vld [vmem:[#allocation8 + $0x8] sm:$0xff]
    %v227 = vld [vmem:[#allocation8 + $0x10] sm:$0xff]
    %v228 = vld [vmem:[#allocation8 + $0x18] sm:$0xff]
    %v229 = vld [vmem:[#allocation8 + $0x20] sm:$0xff]
    %v230 = vld [vmem:[#allocation8 + $0x28] sm:$0xff]
    %v231 = vld [vmem:[#allocation8 + $0x30] sm:$0xff]
    %v232 = vld [vmem:[#allocation8 + $0x38] sm:$0xff]
    %v233 = vld [vmem:[#allocation7] sm:$0x1]
    %235 = vset.pattern.permute.xlu0 0
    %236 = vperm.xlu0 %235, %v225
    %v237 = vpop.permute.xlu0 %236
    %240 = vset.pattern.permute.xlu0 0
    %241 = vperm.xlu0 %240, %v226
    %v242 = vpop.permute.xlu0 %241
    %245 = vset.pattern.permute.xlu0 0
    %246 = vperm.xlu0 %245, %v227
    %v247 = vpop.permute.xlu0 %246
    %250 = vset.pattern.permute.xlu0 0
    %251 = vperm.xlu0 %250, %v228
    %v252 = vpop.permute.xlu0 %251
    %255 = vset.pattern.permute.xlu0 0
    %256 = vperm.xlu0 %255, %v229
    %v257 = vpop.permute.xlu0 %256
    %260 = vset.pattern.permute.xlu0 0
    %261 = vperm.xlu0 %260, %v230
    %v262 = vpop.permute.xlu0 %261
    %265 = vset.pattern.permute.xlu0 0
    %266 = vperm.xlu0 %265, %v231
    %v267 = vpop.permute.xlu0 %266
    %270 = vset.pattern.permute.xlu0 0
    %271 = vperm.xlu0 %270, %v232
    %v272 = vpop.permute.xlu0 %271
    %v275 = vlaneseq
    %v276 = vshrl.u32 %v275, 7
    %v277 = vsub.s32 0, %v276
    %v278 = vrot.slane %v233, %v277
    %v280 = vadd.f32 %v237, %v278
    %v281 = vadd.f32 %v242, %v278
    %v282 = vadd.f32 %v247, %v278
    %v283 = vadd.f32 %v252, %v278
    %v284 = vadd.f32 %v257, %v278
    %v285 = vadd.f32 %v262, %v278
    %v286 = vadd.f32 %v267, %v278
    %v287 = vadd.f32 %v272, %v278
    %vm288 = vcmp.gt.f32.partialorder %v280, 0.0
    %vm289 = vcmp.gt.f32.partialorder %v281, 0.0
    %vm290 = vcmp.gt.f32.partialorder %v282, 0.0
    %vm291 = vcmp.gt.f32.partialorder %v283, 0.0
    %vm292 = vcmp.gt.f32.partialorder %v284, 0.0
    %vm293 = vcmp.gt.f32.partialorder %v285, 0.0
    %vm294 = vcmp.gt.f32.partialorder %v286, 0.0
    %vm295 = vcmp.gt.f32.partialorder %v287, 0.0
    %v296 = vmul.f32 %v280, 0.2
    %v297 = vmul.f32 %v281, 0.2
    %v298 = vmul.f32 %v282, 0.2
    %v299 = vmul.f32 %v283, 0.2
    %v300 = vmul.f32 %v284, 0.2
    %v301 = vmul.f32 %v285, 0.2
    %v302 = vmul.f32 %v286, 0.2
    %v303 = vmul.f32 %v287, 0.2
    %v304 = vsel %vm288, %v280, %v296
    %v305 = vsel %vm289, %v281, %v297
    %v306 = vsel %vm290, %v282, %v298
    %v307 = vsel %vm291, %v283, %v299
    %v308 = vsel %vm292, %v284, %v300
    %v309 = vsel %vm293, %v285, %v301
    %v310 = vsel %vm294, %v286, %v302
    %v311 = vsel %vm295, %v287, %v303
    %v312 = vld [vmem:[#allocation10] sm:$0xf]
    %v313 = vld [vmem:[#allocation10 + $0x4] sm:$0xf]
    %v314 = vld [vmem:[#allocation10 + $0x8] sm:$0xf]
    %v315 = vld [vmem:[#allocation10 + $0xc] sm:$0xf]
    %v316 = vld [vmem:[#allocation10 + $0x10] sm:$0xf]
    %v317 = vld [vmem:[#allocation10 + $0x14] sm:$0xf]
    %v318 = vld [vmem:[#allocation10 + $0x18] sm:$0xf]
    %v319 = vld [vmem:[#allocation10 + $0x1c] sm:$0xf]
    %v320 = vunpack.c.l.bf16 %v312
    %v321 = vunpack.c.l.bf16 %v313
    %v322 = vunpack.c.l.bf16 %v314
    %v323 = vunpack.c.l.bf16 %v315
    %v324 = vunpack.c.l.bf16 %v316
    %v325 = vunpack.c.l.bf16 %v317
    %v326 = vunpack.c.l.bf16 %v318
    %v327 = vunpack.c.l.bf16 %v319
    %v328 = vadd.f32 %v304, %v320
    %v329 = vadd.f32 %v305, %v321
    %v330 = vadd.f32 %v306, %v322
    %v331 = vadd.f32 %v307, %v323
    %v332 = vadd.f32 %v308, %v324
    %v333 = vadd.f32 %v309, %v325
    %v334 = vadd.f32 %v310, %v326
    %v335 = vadd.f32 %v311, %v327
    %vm336 = vcmask 523264
    %v337 = vsel %vm336, %v328, -inf
    %338 = vmax.xlane.f32.xlu0 %v337
    %v339 = vpop.xlane.xlu0 %338
    %v340 = vsel %vm336, %v329, -inf
    %341 = vmax.xlane.f32.xlu0 %v340
    %v342 = vpop.xlane.xlu0 %341
    %v343 = vsel %vm336, %v330, -inf
    %344 = vmax.xlane.f32.xlu0 %v343
    %v345 = vpop.xlane.xlu0 %344
    %v346 = vsel %vm336, %v331, -inf
    %347 = vmax.xlane.f32.xlu0 %v346
    %v348 = vpop.xlane.xlu0 %347
    %v349 = vsel %vm336, %v332, -inf
    %350 = vmax.xlane.f32.xlu0 %v349
    %v351 = vpop.xlane.xlu0 %350
    %v352 = vsel %vm336, %v333, -inf
    %353 = vmax.xlane.f32.xlu0 %v352
    %v354 = vpop.xlane.xlu0 %353
    %v355 = vsel %vm336, %v334, -inf
    %356 = vmax.xlane.f32.xlu0 %v355
    %v357 = vpop.xlane.xlu0 %356
    %v358 = vsel %vm336, %v335, -inf
    %359 = vmax.xlane.f32.xlu0 %v358
    %v360 = vpop.xlane.xlu0 %359
    %v361 = vsub.f32 %v328, %v339
    %v362 = vsub.f32 %v329, %v342
    %v363 = vsub.f32 %v330, %v345
    %v364 = vsub.f32 %v331, %v348
    %v365 = vsub.f32 %v332, %v351
    %v366 = vsub.f32 %v333, %v354
    %v367 = vsub.f32 %v334, %v357
    %v368 = vsub.f32 %v335, %v360
    %v369 = vmul.f32 %v361, 1.442695
    %v370 = vpow.pop %v369
    %v371 = vmul.f32 %v362, 1.442695
    %v372 = vpow.pop %v371
    %v373 = vmul.f32 %v363, 1.442695
    %v374 = vpow.pop %v373
    %v375 = vmul.f32 %v364, 1.442695
    %v376 = vpow.pop %v375
    %v377 = vmul.f32 %v365, 1.442695
    %v378 = vpow.pop %v377
    %v379 = vmul.f32 %v366, 1.442695
    %v380 = vpow.pop %v379
    %v381 = vmul.f32 %v367, 1.442695
    %v382 = vpow.pop %v381
    %v383 = vmul.f32 %v368, 1.442695
    %v384 = vpow.pop %v383
    %v385 = vsel %vm336, %v370, 0.0
    %386 = vadd.xlane.f32.xlu0 %v385
    %v387 = vpop.xlane.xlu0 %386
    %v388 = vsel %vm336, %v372, 0.0
    %389 = vadd.xlane.f32.xlu0 %v388
    %v390 = vpop.xlane.xlu0 %389
    %v391 = vsel %vm336, %v374, 0.0
    %392 = vadd.xlane.f32.xlu0 %v391
    %v393 = vpop.xlane.xlu0 %392
    %v394 = vsel %vm336, %v376, 0.0
    %395 = vadd.xlane.f32.xlu0 %v394
    %v396 = vpop.xlane.xlu0 %395
    %v397 = vsel %vm336, %v378, 0.0
    %398 = vadd.xlane.f32.xlu0 %v397
    %v399 = vpop.xlane.xlu0 %398
    %v400 = vsel %vm336, %v380, 0.0
    %401 = vadd.xlane.f32.xlu0 %v400
    %v402 = vpop.xlane.xlu0 %401
    %v403 = vsel %vm336, %v382, 0.0
    %404 = vadd.xlane.f32.xlu0 %v403
    %v405 = vpop.xlane.xlu0 %404
    %v406 = vsel %vm336, %v384, 0.0
    %407 = vadd.xlane.f32.xlu0 %v406
    %v408 = vpop.xlane.xlu0 %407
    %v409 = vrcp.pop %v387
    %v410 = vmul.f32 1.0, %v409
    %v411 = vrcp.pop %v390
    %v412 = vmul.f32 1.0, %v411
    %v413 = vrcp.pop %v393
    %v414 = vmul.f32 1.0, %v413
    %v415 = vrcp.pop %v396
    %v416 = vmul.f32 1.0, %v415
    %v417 = vrcp.pop %v399
    %v418 = vmul.f32 1.0, %v417
    %v419 = vrcp.pop %v402
    %v420 = vmul.f32 1.0, %v419
    %v421 = vrcp.pop %v405
    %v422 = vmul.f32 1.0, %v421
    %v423 = vrcp.pop %v408
    %v424 = vmul.f32 1.0, %v423
    %v425 = vmul.f32 %v370, %v410
    %v426 = vmul.f32 %v372, %v412
    %v427 = vmul.f32 %v374, %v414
    %v428 = vmul.f32 %v376, %v416
    %v429 = vmul.f32 %v378, %v418
    %v430 = vmul.f32 %v380, %v420
    %v431 = vmul.f32 %v382, %v422
    %v432 = vmul.f32 %v384, %v424
    %v433 = vpack.c.bf16 %v426, %v425
    %v434 = vpack.c.bf16 %v428, %v427
    %v435 = vpack.c.bf16 %v430, %v429
    %v436 = vpack.c.bf16 %v432, %v431
    %v437 = vpack.c.bf16 %v198, %v195
    %v438 = vpack.c.bf16 %v206, %v203
    %v439 = vpack.c.bf16 %v214, %v211
    %v440 = vpack.c.bf16 %v222, %v219
    %v441 = vld [vmem:[#allocation11] sm:$0x1]
    %v443 = vlaneseq
    %v444 = vshrl.u32 %v443, 7
    %v445 = vsub.s32 0, %v444
    %v446 = vrot.slane %v441, %v445
    %v449 = vsel %vm336, %v433, 0
    %v452 = vsel %vm336, %v434, 0
    %v455 = vsel %vm336, %v435, 0
    %v458 = vsel %vm336, %v436, 0
    %460 = vmatprep.subr.bf16.mxu0 0
    %461 = vmatpush1.bf16.msra.mxu0 %v437
    %462 = vmatprep.subr.bf16.mxu0 0
    %463 = vmatpush1.bf16.msra.mxu0 %v438
    %464 = vmatprep.subr.bf16.mxu0 0
    %465 = vmatpush1.bf16.msra.mxu0 %v439
    %466 = vmatprep.subr.bf16.mxu0 0
    %467 = vmatpush1.bf16.msra.mxu0 %v440
    %468 = vmatprep.subr.bf16.mxu0 0
    %469 = vmatpush1.bf16.msra.mxu0 0
    %470 = vmatprep.subr.bf16.mxu0 0
    %471 = vmatpush1.bf16.msra.mxu0 0
    %472 = vmatprep.subr.bf16.mxu0 0
    %473 = vmatpush1.bf16.msra.mxu0 0
    %474 = vmatprep.subr.bf16.mxu0 0
    %475 = vmatpush1.bf16.msra.mxu0 0
    %476 = vmatprep.subr.bf16.mxu0 0
    %477 = vmatpush1.bf16.msra.mxu0 0
    %478 = vmatprep.subr.bf16.mxu0 0
    %479 = vmatpush1.bf16.msra.mxu0 0
    %480 = vmatprep.subr.bf16.mxu0 0
    %481 = vmatpush1.bf16.msra.mxu0 0
    %482 = vmatprep.subr.bf16.mxu0 0
    %483 = vmatpush1.bf16.msra.mxu0 0
    %484 = vmatprep.subr.bf16.mxu0 0
    %485 = vmatpush1.bf16.msra.mxu0 0
    %486 = vmatprep.subr.bf16.mxu0 0
    %487 = vmatpush1.bf16.msra.mxu0 0
    %488 = vmatprep.subr.bf16.mxu0 0
    %489 = vmatpush1.bf16.msra.mxu0 0
    %490 = vmatprep.subr.bf16.mxu0 0
    %491 = vmatpush1.bf16.msra.mxu0 0
    %492 = vmatprep.mubr.bf16.mxu0 0
    %493 = vmatmul.mubr.bf16.gmra.mrb[0].mxu0 %v449
    %v494 = vpop.f32.mrb[0].mxu0
    %v495 = vadd.f32 %v446, %v494
    %v496 = vpop.f32.mrb[0].mxu0
    %v497 = vpop.f32.mrb[0].mxu0
    %v498 = vadd.f32 %v446, %v497
    %v499 = vpop.f32.mrb[0].mxu0
    %500 = vmatprep.mubr.bf16.mxu0 0
    %501 = vmatmul.mubr.bf16.gmra.mrb[0].mxu0 %v452
    %v502 = vpop.f32.mrb[0].mxu0
    %v503 = vadd.f32 %v446, %v502
    %v504 = vpop.f32.mrb[0].mxu0
    %v505 = vpop.f32.mrb[0].mxu0
    %v506 = vadd.f32 %v446, %v505
    %v507 = vpop.f32.mrb[0].mxu0
    %508 = vmatprep.mubr.bf16.mxu0 0
    %509 = vmatmul.mubr.bf16.gmra.mrb[0].mxu0 %v455
    %v510 = vpop.f32.mrb[0].mxu0
    %v511 = vadd.f32 %v446, %v510
    %v512 = vpop.f32.mrb[0].mxu0
    %v513 = vpop.f32.mrb[0].mxu0
    %v514 = vadd.f32 %v446, %v513
    %v515 = vpop.f32.mrb[0].mxu0
    %516 = vmatprep.mubr.bf16.mxu0 0
    %517 = vmatmul.mubr.bf16.gmra.mrb[0].mxu0 %v458
    %v518 = vpop.f32.mrb[0].mxu0
    %v519 = vadd.f32 %v446, %v518
    %v520 = vpop.f32.mrb[0].mxu0
    %v521 = vpop.f32.mrb[0].mxu0
    %v522 = vadd.f32 %v446, %v521
    %v523 = vpop.f32.mrb[0].mxu0
    %524 = vdwg.mxu0
    %525 = vst [vmem:[#allocation13] sm:$0xff] %v495
    %526 = vst [vmem:[#allocation13 + $0x8] sm:$0xff] %v498
    %527 = vst [vmem:[#allocation13 + $0x10] sm:$0xff] %v503
    %528 = vst [vmem:[#allocation13 + $0x18] sm:$0xff] %v506
    %529 = vst [vmem:[#allocation13 + $0x20] sm:$0xff] %v511
    %530 = vst [vmem:[#allocation13 + $0x28] sm:$0xff] %v514
    %531 = vst [vmem:[#allocation13 + $0x30] sm:$0xff] %v519
    %532 = vst [vmem:[#allocation13 + $0x38] sm:$0xff] %v522
    // Predicated region
    $region50: #{gat_forward.3} parent=1 // pred_check
      _
    $region51: #{gat_forward.3} parent=1 // pred_check_branch
      %534 = sbr.rel (0) target = $region53
    $region52: #{gat_forward.3} parent=1 // pred_region
      %s536 = ssub.s32 1024, 1024
      %537 = vsyncadd [#allocation4], %s536
      %s538 = sshll.u32 [#allocation13], 4
      %s539 = int_to_ptr.vmem [resolvable:$true] %s538
      %544 = dma.vmem_to_hbm [thread:$0]  %s539, 1024, %s6, [#allocation4], 128, 128, 8
    $region53: #{gat_forward.3} parent=1 // pred_fallthru
      _
    // Predicated region
    $region54: #{gat_forward.3} parent=1 // pred_check
      _
    $region55: #{gat_forward.3} parent=1 // pred_check_branch
      %546 = sbr.rel (0) target = $region57
    $region56: #{gat_forward.3} parent=1 // pred_region
      %547 = dma.done [#allocation4], 1024
    $region57: #{gat_forward.3} parent=1 // pred_fallthru
      _
    %548 = vsyncpa [#allocation3], 1
    %549 = vsyncpa [#allocation6], 1
    %550 = vsyncpa [#allocation9], 1
    %551 = vsyncpa [#allocation12], 1
    %552 = vsyncpa [#allocation4], 1

</llo_original>
